<compile_context>
chip_gen: v5e
topology: v5e:2x2
jax: 0.10.0
libtpu: 0.0.40
codegen_flags: <defaults>
</compile_context>

<pallas_src>
import math
import jax
import jax.numpy as jnp
from jax import lax
from jax.experimental import pallas as pl
from jax.experimental.pallas import tpu as pltpu


def _lstm_kernel(x_ref, u_ref, v_ref, b_ref,
                 seq_ref, h_out_ref, c_out_ref,
                 z_sc, h_sc, c_sc):
    """One grid step = one (batch tile, time block).

    x_ref     : (T_B, TB_b, I)        raw inputs for this time block (seq-major)
    u_ref     : (I, 4H)               fused input weights  [U_i|U_f|U_c|U_o]
    v_ref     : (H, 4H)               fused recurrent wts  [V_i|V_f|V_c|V_o]
    b_ref     : (1, 4H)               fused bias
    seq_ref   : (T_B//G, TB_b, G*H)   lane-packed hidden states (G steps per row)
    h_out_ref : (TB_b, H)             final hidden state (written at last block)
    c_out_ref : (TB_b, H)             final cell state
    z_sc      : (T_B, TB_b, 4H)       scratch: x@U + b for the whole time block
    h_sc/c_sc : (TB_b, H)             VMEM carries across time blocks
    """
    t_blk = pl.program_id(1)
    n_t = pl.num_programs(1)
    T_B, TB_b, I = x_ref.shape
    H = h_sc.shape[1]
    n_groups = seq_ref.shape[0]
    G = seq_ref.shape[2] // H

    @pl.when(t_blk == 0)
    def _():
        h_sc[...] = jnp.zeros_like(h_sc)
        c_sc[...] = jnp.zeros_like(c_sc)

    # Input projection for the WHOLE time block, fused into the kernel (no HBM
    # round trip for an xproj tensor): one (T_B*TB_b, I) @ (I, 4H) MXU pass.
    x_all = x_ref[...].reshape(T_B * TB_b, I)
    z_sc[...] = (jnp.dot(x_all, u_ref[...], preferred_element_type=jnp.float32)
                 + b_ref[...]).reshape(T_B, TB_b, 4 * H)

    v = v_ref[...]  # loop-invariant recurrent weights, held live across the loop

    def group_step(gi, carry):
        h, c = carry
        outs = []
        for j in range(G):          # static unroll: G consecutive timesteps
            t = gi * G + j
            # Single fused recurrent matmul: (TB_b, H) @ (H, 4H) -> (TB_b, 4H)
            z = z_sc[t] + jnp.dot(h, v, preferred_element_type=jnp.float32)
            g = jax.nn.sigmoid(z)   # all four gates, one EUP pass (lane-dense 4H)
            i_t = g[:, 0 * H:1 * H]
            f_t = g[:, 1 * H:2 * H]
            g_t = g[:, 2 * H:3 * H]     # reference module uses sigmoid (not tanh)
            o_t = g[:, 3 * H:4 * H]
            c = f_t * c + i_t * g_t
            h = o_t * jnp.tanh(c)
            outs.append(h)
        # Lane-dense store: G timesteps concatenated along lanes -> G*H wide.
        seq_ref[gi] = jnp.concatenate(outs, axis=-1)
        return h, c

    unroll = n_groups if n_groups <= 8 else 8
    h_f, c_f = lax.fori_loop(0, n_groups, group_step,
                             (h_sc[...], c_sc[...]), unroll=unroll)
    h_sc[...] = h_f
    c_sc[...] = c_f

    @pl.when(t_blk == n_t - 1)
    def _():
        h_out_ref[...] = h_f
        c_out_ref[...] = c_f


def _vmem_capacity_bytes():
    """Physical VMEM of the local chip (64 MiB on v7x, 128 MiB on v5e/v6e)."""
    try:
        cap = int(pltpu.get_tpu_info().vmem_capacity_bytes)
        if cap > 0:
            return cap
    except Exception:
        pass
    return 128 * 2 ** 20


def _plan_tiles(B, S, I, H):
    """Pick (T_B, TB_b, lane-pack factor G, vmem_limit) from the chip's VMEM."""
    f32 = 4
    vmem_cap = _vmem_capacity_bytes()
    # ~75% of physical VMEM: ~48 MiB on v7x, ~96 MiB on v5e/v6e.
    budget = vmem_cap * 3 // 4

    # Lane-packing factor: fold G timesteps into the last dim so hidden_seq's
    # writeback is lane-dense (last dim a multiple of 128).
    if H % 128 == 0:
        G = 1
    elif 128 % H == 0 and S % (128 // H) == 0:
        G = 128 // H
    else:
        G = 1

    # Batch tiles: split across the two v7x TensorCores when B allows (8-aligned
    # halves). v5e/v6e have one TensorCore, so keep the full batch per tile there.
    is_v7x_like = vmem_cap <= 64 * 2 ** 20
    TB_b = B // 2 if (is_v7x_like and B >= 16 and (B // 2) % 8 == 0) else B

    weights = (I * 4 * H + H * 4 * H + 4 * H) * f32

    def footprint(t_b):
        x_blk = t_b * TB_b * I * f32
        seq_blk = t_b * TB_b * H * f32
        z_scr = t_b * TB_b * 4 * H * f32
        carries = 2 * TB_b * H * f32
        work = 8 * TB_b * 4 * H * f32          # gate-slab / temp headroom
        return 2 * x_blk + 2 * seq_blk + z_scr + 2 * weights + carries + work

    # Largest time block <= 64 steps that divides S, is a multiple of G and fits.
    T_B = G
    cap = min(S, 64)
    t = G
    while t <= cap:
        if S % t == 0 and footprint(t) <= budget:
            T_B = t
        t += G

    return T_B, TB_b, G, int(budget)


def my_lstm_forward(x, params):
    """x: (B, S, I) float32.  Returns (hidden_seq (B,S,H), (h_T, c_T))."""
    B, S, I = x.shape
    H = params["U_i"].shape[1]

    # Fuse the four gates' weights.
    U_fused = jnp.concatenate(
        [params["U_i"], params["U_f"], params["U_c"], params["U_o"]], axis=1)  # (I,4H)
    V_fused = jnp.concatenate(
        [params["V_i"], params["V_f"], params["V_c"], params["V_o"]], axis=1)  # (H,4H)
    b_fused = jnp.concatenate(
        [params["b_i"], params["b_f"], params["b_c"], params["b_o"]], axis=0
    ).reshape(1, 4 * H)                                                        # (1,4H)

    # Seq-major input so each kernel block is a contiguous (T_B, TB_b, I) tile.
    x_sm = jnp.transpose(x, (1, 0, 2))  # (S, B, I)

    T_B, TB_b, G, vmem_limit = _plan_tiles(B, S, I, H)
    n_time = S // T_B
    n_batch = B // TB_b

    out_shapes = (
        jax.ShapeDtypeStruct((S // G, B, G * H), jnp.float32),  # packed hidden_seq
        jax.ShapeDtypeStruct((B, H), jnp.float32),              # h_T
        jax.ShapeDtypeStruct((B, H), jnp.float32),              # c_T
    )

    grid_spec = pltpu.PrefetchScalarGridSpec(
        num_scalar_prefetch=0,
        grid=(n_batch, n_time),
        in_specs=[
            pl.BlockSpec((T_B, TB_b, I), lambda b, t: (t, b, 0)),       # x
            pl.BlockSpec((I, 4 * H), lambda b, t: (0, 0)),              # U_fused
            pl.BlockSpec((H, 4 * H), lambda b, t: (0, 0)),              # V_fused
            pl.BlockSpec((1, 4 * H), lambda b, t: (0, 0)),              # b_fused
        ],
        out_specs=[
            pl.BlockSpec((T_B // G, TB_b, G * H), lambda b, t: (t, b, 0)),  # packed seq
            pl.BlockSpec((TB_b, H), lambda b, t: (b, 0)),                   # h_T
            pl.BlockSpec((TB_b, H), lambda b, t: (b, 0)),                   # c_T
        ],
        scratch_shapes=[
            pltpu.VMEM((T_B, TB_b, 4 * H), jnp.float32),  # per-block x@U+b
            pltpu.VMEM((TB_b, H), jnp.float32),           # h carry
            pltpu.VMEM((TB_b, H), jnp.float32),           # c carry
        ],
    )

    packed_seq, h_T, c_T = pl.pallas_call(
        _lstm_kernel,
        out_shape=out_shapes,
        grid_spec=grid_spec,
        compiler_params=pltpu.CompilerParams(
            dimension_semantics=("parallel", "arbitrary"),
            vmem_limit_bytes=vmem_limit),
    )(x_sm, U_fused, V_fused, b_fused)

    # Un-pack the lane-dense output back to the module's (B, S, H) layout.
    if G > 1:
        hidden_seq = (packed_seq.reshape(S // G, B, G, H)
                      .transpose(1, 0, 2, 3)
                      .reshape(B, S, H))
    else:
        hidden_seq = jnp.transpose(packed_seq, (1, 0, 2))
    return hidden_seq, (h_T, c_T)


def init_params(key, input_size, hidden_size):
    stdv = 1.0 / math.sqrt(hidden_size)
    names = []
    for g in ("i", "f", "c", "o"):
        names += [(f"U_{g}", (input_size, hidden_size)),
                  (f"V_{g}", (hidden_size, hidden_size)),
                  (f"b_{g}", (hidden_size,))]
    keys = jax.random.split(key, len(names))
    params = {}
    for (name, shape), k in zip(names, keys):
        params[name] = jax.random.uniform(
            k, shape, minval=-stdv, maxval=stdv, dtype=jnp.float32)
    return params


def reference_forward(x, params):
    """Plain-JAX reference matching the PyTorch module semantics."""
    B, S, I = x.shape
    H = params["U_i"].shape[1]
    h = jnp.zeros((B, H), jnp.float32)
    c = jnp.zeros((B, H), jnp.float32)
    outs = []
    for t in range(S):
        x_t = x[:, t, :]
        gate = lambda g: jax.nn.sigmoid(
            x_t @ params[f"U_{g}"] + h @ params[f"V_{g}"] + params[f"b_{g}"])
        i_t, f_t, g_t, o_t = gate("i"), gate("f"), gate("c"), gate("o")
        c = f_t * c + i_t * g_t
        h = o_t * jnp.tanh(c)
        outs.append(h)
    return jnp.stack(outs, axis=1), (h, c)


if __name__ == "__main__":
    B, S, I, H = 8, 8, 16, 32
    key = jax.random.PRNGKey(0)
    k_x, k_p = jax.random.split(key)
    x = jax.random.normal(k_x, (B, S, I), dtype=jnp.float32)
    params = init_params(k_p, I, H)

    hidden_seq, (h_T, c_T) = my_lstm_forward(x, params)
    jax.block_until_ready((hidden_seq, h_T, c_T))

    ref_seq, (ref_h, ref_c) = reference_forward(x, params)
    assert hidden_seq.shape == (B, S, H)
    assert h_T.shape == (B, H) and c_T.shape == (B, H)
    assert jnp.allclose(hidden_seq, ref_seq, atol=2e-5)
    assert jnp.allclose(h_T, ref_h, atol=2e-5)
    assert jnp.allclose(c_T, ref_c, atol=2e-5)

    print("KERNEL_OK")
</pallas_src>

<mosaic_0001>
module attributes {stable_mosaic.version = 11 : i64} {
  func.func @_lstm_kernel(%arg0: i32, %arg1: i32, %arg2: memref<8x8x16xf32, #tpu.memory_space<vmem>>, %arg3: memref<16x128xf32, #tpu.memory_space<vmem>>, %arg4: memref<32x128xf32, #tpu.memory_space<vmem>>, %arg5: memref<1x128xf32, #tpu.memory_space<vmem>>, %arg6: memref<2x8x128xf32, #tpu.memory_space<vmem>>, %arg7: memref<8x32xf32, #tpu.memory_space<vmem>>, %arg8: memref<8x32xf32, #tpu.memory_space<vmem>>, %arg9: memref<8x8x128xf32, #tpu.memory_space<vmem>>, %arg10: memref<8x32xf32, #tpu.memory_space<vmem>>, %arg11: memref<8x32xf32, #tpu.memory_space<vmem>>) attributes {dimension_semantics = [#tpu.dimension_semantics<parallel>, #tpu.dimension_semantics<arbitrary>], iteration_bounds = array<i64: 1, 1>, scalar_prefetch = 0 : i64, scratch_operands = 3 : i64, tpu.core_type = #tpu.core_type<tc>, window_params = [{transform_indices = @transform_0, window_bounds = array<i64: 8, 8, 16>}, {pipeline_mode = #tpu.pipeline_mode<synchronous>, transform_indices = @transform_1, window_bounds = array<i64: 16, 128>}, {pipeline_mode = #tpu.pipeline_mode<synchronous>, transform_indices = @transform_2, window_bounds = array<i64: 32, 128>}, {pipeline_mode = #tpu.pipeline_mode<synchronous>, transform_indices = @transform_3, window_bounds = array<i64: 1, 128>}, {transform_indices = @transform_4, window_bounds = array<i64: 2, 8, 128>}, {transform_indices = @transform_5, window_bounds = array<i64: 8, 32>}, {transform_indices = @transform_6, window_bounds = array<i64: 8, 32>}]} {
    %c0_i32 = arith.constant 0 : i32
    %0 = arith.cmpi eq, %arg1, %c0_i32 : i32
    %1 = arith.extui %0 : i1 to i32
    %c0_i32_0 = arith.constant 0 : i32
    %2 = arith.cmpi ne, %1, %c0_i32_0 : i32
    scf.if %2 {
      %cst_73 = arith.constant 0.000000e+00 : f32
      %198 = vector.broadcast %cst_73 : f32 to vector<8x32xf32>
      %c0_74 = arith.constant 0 : index
      %c0_75 = arith.constant 0 : index
      %199 = vector.load %arg10[%c0_74, %c0_75] : memref<8x32xf32, #tpu.memory_space<vmem>>, vector<8x32xf32>
      tpu.vector_store %arg10[%c0_74, %c0_75], %198 {strides = array<i32>} : memref<8x32xf32, #tpu.memory_space<vmem>>, vector<8x32xf32>,
      %cst_76 = arith.constant 0.000000e+00 : f32
      %200 = vector.broadcast %cst_76 : f32 to vector<8x32xf32>
      %c0_77 = arith.constant 0 : index
      %c0_78 = arith.constant 0 : index
      %201 = vector.load %arg11[%c0_77, %c0_78] : memref<8x32xf32, #tpu.memory_space<vmem>>, vector<8x32xf32>
      tpu.vector_store %arg11[%c0_77, %c0_78], %200 {strides = array<i32>} : memref<8x32xf32, #tpu.memory_space<vmem>>, vector<8x32xf32>,
    } else {
    }
    %c0 = arith.constant 0 : index
    %c0_1 = arith.constant 0 : index
    %c0_2 = arith.constant 0 : index
    %3 = vector.load %arg2[%c0, %c0_1, %c0_2] : memref<8x8x16xf32, #tpu.memory_space<vmem>>, vector<8x8x16xf32>
    %4 = vector.shape_cast %3 : vector<8x8x16xf32> to vector<64x16xf32>
    %c0_3 = arith.constant 0 : index
    %c0_4 = arith.constant 0 : index
    %5 = vector.load %arg3[%c0_3, %c0_4] : memref<16x128xf32, #tpu.memory_space<vmem>>, vector<16x128xf32>
    %cst = arith.constant dense<0.000000e+00> : vector<64x128xf32>
    %6 = tpu.matmul %4, %5, %cst {dimension_numbers = #tpu.dot_dimension_numbers<[1], [0], [0], [1], [0, 0, 1, 1], [], []>} : vector<64x16xf32>, vector<16x128xf32>, vector<64x128xf32> -> vector<64x128xf32>
    %c0_5 = arith.constant 0 : index
    %c0_6 = arith.constant 0 : index
    %7 = vector.load %arg5[%c0_5, %c0_6] : memref<1x128xf32, #tpu.memory_space<vmem>>, vector<1x128xf32>
    %8 = vector.broadcast %7 : vector<1x128xf32> to vector<64x128xf32>
    %9 = arith.addf %6, %8 : vector<64x128xf32>
    %10 = vector.shape_cast %9 : vector<64x128xf32> to vector<8x8x128xf32>
    %c0_7 = arith.constant 0 : index
    %c0_8 = arith.constant 0 : index
    %c0_9 = arith.constant 0 : index
    %11 = vector.load %arg9[%c0_7, %c0_8, %c0_9] : memref<8x8x128xf32, #tpu.memory_space<vmem>>, vector<8x8x128xf32>
    tpu.vector_store %arg9[%c0_7, %c0_8, %c0_9], %10 {strides = array<i32>} : memref<8x8x128xf32, #tpu.memory_space<vmem>>, vector<8x8x128xf32>,
    %c0_10 = arith.constant 0 : index
    %c0_11 = arith.constant 0 : index
    %12 = vector.load %arg4[%c0_10, %c0_11] : memref<32x128xf32, #tpu.memory_space<vmem>>, vector<32x128xf32>
    %c0_12 = arith.constant 0 : index
    %c0_13 = arith.constant 0 : index
    %13 = vector.load %arg10[%c0_12, %c0_13] : memref<8x32xf32, #tpu.memory_space<vmem>>, vector<8x32xf32>
    %c0_14 = arith.constant 0 : index
    %c0_15 = arith.constant 0 : index
    %14 = vector.load %arg11[%c0_14, %c0_15] : memref<8x32xf32, #tpu.memory_space<vmem>>, vector<8x32xf32>
    %c0_i32_16 = arith.constant 0 : i32
    %c4_i32 = arith.constant 4 : i32
    %15 = arith.muli %c0_i32_16, %c4_i32 : i32
    %c0_i32_17 = arith.constant 0 : i32
    %16 = arith.addi %15, %c0_i32_17 : i32
    %17 = arith.index_cast %16 : i32 to index
    %c0_18 = arith.constant 0 : index
    %c0_19 = arith.constant 0 : index
    %18 = vector.load %arg9[%17, %c0_18, %c0_19] : memref<8x8x128xf32, #tpu.memory_space<vmem>>, vector<1x8x128xf32>
    %19 = vector.shape_cast %18 : vector<1x8x128xf32> to vector<8x128xf32>
    %cst_20 = arith.constant dense<0.000000e+00> : vector<8x128xf32>
    %20 = tpu.matmul %13, %12, %cst_20 {dimension_numbers = #tpu.dot_dimension_numbers<[1], [0], [0], [1], [0, 0, 1, 1], [], []>} : vector<8x32xf32>, vector<32x128xf32>, vector<8x128xf32> -> vector<8x128xf32>
    %21 = arith.addf %19, %20 : vector<8x128xf32>
    %22 = arith.negf %21 : vector<8x128xf32>
    %23 = math.exp %22 : vector<8x128xf32>
    %cst_21 = arith.constant 1.000000e+00 : f32
    %24 = vector.broadcast %cst_21 : f32 to vector<8x128xf32>
    %25 = arith.addf %24, %23 : vector<8x128xf32>
    %26 = arith.divf %24, %25 : vector<8x128xf32>
    %27 = vector.extract_strided_slice %26 {offsets = [0, 0], sizes = [8, 32], strides = [1, 1]} : vector<8x128xf32> to vector<8x32xf32>
    %28 = vector.extract_strided_slice %26 {offsets = [0, 32], sizes = [8, 32], strides = [1, 1]} : vector<8x128xf32> to vector<8x32xf32>
    %29 = vector.extract_strided_slice %26 {offsets = [0, 64], sizes = [8, 32], strides = [1, 1]} : vector<8x128xf32> to vector<8x32xf32>
    %30 = vector.extract_strided_slice %26 {offsets = [0, 96], sizes = [8, 32], strides = [1, 1]} : vector<8x128xf32> to vector<8x32xf32>
    %31 = arith.mulf %28, %14 : vector<8x32xf32>
    %32 = arith.mulf %27, %29 : vector<8x32xf32>
    %33 = arith.addf %31, %32 : vector<8x32xf32>
    %34 = math.tanh %33 : vector<8x32xf32>
    %35 = arith.mulf %30, %34 : vector<8x32xf32>
    %c4_i32_22 = arith.constant 4 : i32
    %36 = arith.muli %c0_i32_16, %c4_i32_22 : i32
    %c1_i32 = arith.constant 1 : i32
    %37 = arith.addi %36, %c1_i32 : i32
    %38 = arith.index_cast %37 : i32 to index
    %c0_23 = arith.constant 0 : index
    %c0_24 = arith.constant 0 : index
    %39 = vector.load %arg9[%38, %c0_23, %c0_24] : memref<8x8x128xf32, #tpu.memory_space<vmem>>, vector<1x8x128xf32>
    %40 = vector.shape_cast %39 : vector<1x8x128xf32> to vector<8x128xf32>
    %cst_25 = arith.constant dense<0.000000e+00> : vector<8x128xf32>
    %41 = tpu.matmul %35, %12, %cst_25 {dimension_numbers = #tpu.dot_dimension_numbers<[1], [0], [0], [1], [0, 0, 1, 1], [], []>} : vector<8x32xf32>, vector<32x128xf32>, vector<8x128xf32> -> vector<8x128xf32>
    %42 = arith.addf %40, %41 : vector<8x128xf32>
    %43 = arith.negf %42 : vector<8x128xf32>
    %44 = math.exp %43 : vector<8x128xf32>
    %cst_26 = arith.constant 1.000000e+00 : f32
    %45 = vector.broadcast %cst_26 : f32 to vector<8x128xf32>
    %46 = arith.addf %45, %44 : vector<8x128xf32>
    %47 = arith.divf %45, %46 : vector<8x128xf32>
    %48 = vector.extract_strided_slice %47 {offsets = [0, 0], sizes = [8, 32], strides = [1, 1]} : vector<8x128xf32> to vector<8x32xf32>
    %49 = vector.extract_strided_slice %47 {offsets = [0, 32], sizes = [8, 32], strides = [1, 1]} : vector<8x128xf32> to vector<8x32xf32>
    %50 = vector.extract_strided_slice %47 {offsets = [0, 64], sizes = [8, 32], strides = [1, 1]} : vector<8x128xf32> to vector<8x32xf32>
    %51 = vector.extract_strided_slice %47 {offsets = [0, 96], sizes = [8, 32], strides = [1, 1]} : vector<8x128xf32> to vector<8x32xf32>
    %52 = arith.mulf %49, %33 : vector<8x32xf32>
    %53 = arith.mulf %48, %50 : vector<8x32xf32>
    %54 = arith.addf %52, %53 : vector<8x32xf32>
    %55 = math.tanh %54 : vector<8x32xf32>
    %56 = arith.mulf %51, %55 : vector<8x32xf32>
    %c4_i32_27 = arith.constant 4 : i32
    %57 = arith.muli %c0_i32_16, %c4_i32_27 : i32
    %c2_i32 = arith.constant 2 : i32
    %58 = arith.addi %57, %c2_i32 : i32
    %59 = arith.index_cast %58 : i32 to index
    %c0_28 = arith.constant 0 : index
    %c0_29 = arith.constant 0 : index
    %60 = vector.load %arg9[%59, %c0_28, %c0_29] : memref<8x8x128xf32, #tpu.memory_space<vmem>>, vector<1x8x128xf32>
    %61 = vector.shape_cast %60 : vector<1x8x128xf32> to vector<8x128xf32>
    %cst_30 = arith.constant dense<0.000000e+00> : vector<8x128xf32>
    %62 = tpu.matmul %56, %12, %cst_30 {dimension_numbers = #tpu.dot_dimension_numbers<[1], [0], [0], [1], [0, 0, 1, 1], [], []>} : vector<8x32xf32>, vector<32x128xf32>, vector<8x128xf32> -> vector<8x128xf32>
    %63 = arith.addf %61, %62 : vector<8x128xf32>
    %64 = arith.negf %63 : vector<8x128xf32>
    %65 = math.exp %64 : vector<8x128xf32>
    %cst_31 = arith.constant 1.000000e+00 : f32
    %66 = vector.broadcast %cst_31 : f32 to vector<8x128xf32>
    %67 = arith.addf %66, %65 : vector<8x128xf32>
    %68 = arith.divf %66, %67 : vector<8x128xf32>
    %69 = vector.extract_strided_slice %68 {offsets = [0, 0], sizes = [8, 32], strides = [1, 1]} : vector<8x128xf32> to vector<8x32xf32>
    %70 = vector.extract_strided_slice %68 {offsets = [0, 32], sizes = [8, 32], strides = [1, 1]} : vector<8x128xf32> to vector<8x32xf32>
    %71 = vector.extract_strided_slice %68 {offsets = [0, 64], sizes = [8, 32], strides = [1, 1]} : vector<8x128xf32> to vector<8x32xf32>
    %72 = vector.extract_strided_slice %68 {offsets = [0, 96], sizes = [8, 32], strides = [1, 1]} : vector<8x128xf32> to vector<8x32xf32>
    %73 = arith.mulf %70, %54 : vector<8x32xf32>
    %74 = arith.mulf %69, %71 : vector<8x32xf32>
    %75 = arith.addf %73, %74 : vector<8x32xf32>
    %76 = math.tanh %75 : vector<8x32xf32>
    %77 = arith.mulf %72, %76 : vector<8x32xf32>
    %c4_i32_32 = arith.constant 4 : i32
    %78 = arith.muli %c0_i32_16, %c4_i32_32 : i32
    %c3_i32 = arith.constant 3 : i32
    %79 = arith.addi %78, %c3_i32 : i32
    %80 = arith.index_cast %79 : i32 to index
    %c0_33 = arith.constant 0 : index
    %c0_34 = arith.constant 0 : index
    %81 = vector.load %arg9[%80, %c0_33, %c0_34] : memref<8x8x128xf32, #tpu.memory_space<vmem>>, vector<1x8x128xf32>
    %82 = vector.shape_cast %81 : vector<1x8x128xf32> to vector<8x128xf32>
    %cst_35 = arith.constant dense<0.000000e+00> : vector<8x128xf32>
    %83 = tpu.matmul %77, %12, %cst_35 {dimension_numbers = #tpu.dot_dimension_numbers<[1], [0], [0], [1], [0, 0, 1, 1], [], []>} : vector<8x32xf32>, vector<32x128xf32>, vector<8x128xf32> -> vector<8x128xf32>
    %84 = arith.addf %82, %83 : vector<8x128xf32>
    %85 = arith.negf %84 : vector<8x128xf32>
    %86 = math.exp %85 : vector<8x128xf32>
    %cst_36 = arith.constant 1.000000e+00 : f32
    %87 = vector.broadcast %cst_36 : f32 to vector<8x128xf32>
    %88 = arith.addf %87, %86 : vector<8x128xf32>
    %89 = arith.divf %87, %88 : vector<8x128xf32>
    %90 = vector.extract_strided_slice %89 {offsets = [0, 0], sizes = [8, 32], strides = [1, 1]} : vector<8x128xf32> to vector<8x32xf32>
    %91 = vector.extract_strided_slice %89 {offsets = [0, 32], sizes = [8, 32], strides = [1, 1]} : vector<8x128xf32> to vector<8x32xf32>
    %92 = vector.extract_strided_slice %89 {offsets = [0, 64], sizes = [8, 32], strides = [1, 1]} : vector<8x128xf32> to vector<8x32xf32>
    %93 = vector.extract_strided_slice %89 {offsets = [0, 96], sizes = [8, 32], strides = [1, 1]} : vector<8x128xf32> to vector<8x32xf32>
    %94 = arith.mulf %91, %75 : vector<8x32xf32>
    %95 = arith.mulf %90, %92 : vector<8x32xf32>
    %96 = arith.addf %94, %95 : vector<8x32xf32>
    %97 = math.tanh %96 : vector<8x32xf32>
    %98 = arith.mulf %93, %97 : vector<8x32xf32>
    %99 = tpu.concatenate %35, %56, %77, %98 in 1 : vector<8x32xf32>, vector<8x32xf32>, vector<8x32xf32>, vector<8x32xf32> -> vector<8x128xf32>
    %100 = arith.index_cast %c0_i32_16 : i32 to index
    %c0_37 = arith.constant 0 : index
    %c0_38 = arith.constant 0 : index
    %101 = vector.load %arg6[%100, %c0_37, %c0_38] : memref<2x8x128xf32, #tpu.memory_space<vmem>>, vector<1x8x128xf32>
    %102 = vector.shape_cast %101 : vector<1x8x128xf32> to vector<8x128xf32>
    %103 = vector.shape_cast %99 : vector<8x128xf32> to vector<1x8x128xf32>
    tpu.vector_store %arg6[%100, %c0_37, %c0_38], %103 {strides = array<i32>} : memref<2x8x128xf32, #tpu.memory_space<vmem>>, vector<1x8x128xf32>,
    %c1_i32_39 = arith.constant 1 : i32
    %c4_i32_40 = arith.constant 4 : i32
    %104 = arith.muli %c1_i32_39, %c4_i32_40 : i32
    %c0_i32_41 = arith.constant 0 : i32
    %105 = arith.addi %104, %c0_i32_41 : i32
    %106 = arith.index_cast %105 : i32 to index
    %c0_42 = arith.constant 0 : index
    %c0_43 = arith.constant 0 : index
    %107 = vector.load %arg9[%106, %c0_42, %c0_43] : memref<8x8x128xf32, #tpu.memory_space<vmem>>, vector<1x8x128xf32>
    %108 = vector.shape_cast %107 : vector<1x8x128xf32> to vector<8x128xf32>
    %cst_44 = arith.constant dense<0.000000e+00> : vector<8x128xf32>
    %109 = tpu.matmul %98, %12, %cst_44 {dimension_numbers = #tpu.dot_dimension_numbers<[1], [0], [0], [1], [0, 0, 1, 1], [], []>} : vector<8x32xf32>, vector<32x128xf32>, vector<8x128xf32> -> vector<8x128xf32>
    %110 = arith.addf %108, %109 : vector<8x128xf32>
    %111 = arith.negf %110 : vector<8x128xf32>
    %112 = math.exp %111 : vector<8x128xf32>
    %cst_45 = arith.constant 1.000000e+00 : f32
    %113 = vector.broadcast %cst_45 : f32 to vector<8x128xf32>
    %114 = arith.addf %113, %112 : vector<8x128xf32>
    %115 = arith.divf %113, %114 : vector<8x128xf32>
    %116 = vector.extract_strided_slice %115 {offsets = [0, 0], sizes = [8, 32], strides = [1, 1]} : vector<8x128xf32> to vector<8x32xf32>
    %117 = vector.extract_strided_slice %115 {offsets = [0, 32], sizes = [8, 32], strides = [1, 1]} : vector<8x128xf32> to vector<8x32xf32>
    %118 = vector.extract_strided_slice %115 {offsets = [0, 64], sizes = [8, 32], strides = [1, 1]} : vector<8x128xf32> to vector<8x32xf32>
    %119 = vector.extract_strided_slice %115 {offsets = [0, 96], sizes = [8, 32], strides = [1, 1]} : vector<8x128xf32> to vector<8x32xf32>
    %120 = arith.mulf %117, %96 : vector<8x32xf32>
    %121 = arith.mulf %116, %118 : vector<8x32xf32>
    %122 = arith.addf %120, %121 : vector<8x32xf32>
    %123 = math.tanh %122 : vector<8x32xf32>
    %124 = arith.mulf %119, %123 : vector<8x32xf32>
    %c4_i32_46 = arith.constant 4 : i32
    %125 = arith.muli %c1_i32_39, %c4_i32_46 : i32
    %c1_i32_47 = arith.constant 1 : i32
    %126 = arith.addi %125, %c1_i32_47 : i32
    %127 = arith.index_cast %126 : i32 to index
    %c0_48 = arith.constant 0 : index
    %c0_49 = arith.constant 0 : index
    %128 = vector.load %arg9[%127, %c0_48, %c0_49] : memref<8x8x128xf32, #tpu.memory_space<vmem>>, vector<1x8x128xf32>
    %129 = vector.shape_cast %128 : vector<1x8x128xf32> to vector<8x128xf32>
    %cst_50 = arith.constant dense<0.000000e+00> : vector<8x128xf32>
    %130 = tpu.matmul %124, %12, %cst_50 {dimension_numbers = #tpu.dot_dimension_numbers<[1], [0], [0], [1], [0, 0, 1, 1], [], []>} : vector<8x32xf32>, vector<32x128xf32>, vector<8x128xf32> -> vector<8x128xf32>
    %131 = arith.addf %129, %130 : vector<8x128xf32>
    %132 = arith.negf %131 : vector<8x128xf32>
    %133 = math.exp %132 : vector<8x128xf32>
    %cst_51 = arith.constant 1.000000e+00 : f32
    %134 = vector.broadcast %cst_51 : f32 to vector<8x128xf32>
    %135 = arith.addf %134, %133 : vector<8x128xf32>
    %136 = arith.divf %134, %135 : vector<8x128xf32>
    %137 = vector.extract_strided_slice %136 {offsets = [0, 0], sizes = [8, 32], strides = [1, 1]} : vector<8x128xf32> to vector<8x32xf32>
    %138 = vector.extract_strided_slice %136 {offsets = [0, 32], sizes = [8, 32], strides = [1, 1]} : vector<8x128xf32> to vector<8x32xf32>
    %139 = vector.extract_strided_slice %136 {offsets = [0, 64], sizes = [8, 32], strides = [1, 1]} : vector<8x128xf32> to vector<8x32xf32>
    %140 = vector.extract_strided_slice %136 {offsets = [0, 96], sizes = [8, 32], strides = [1, 1]} : vector<8x128xf32> to vector<8x32xf32>
    %141 = arith.mulf %138, %122 : vector<8x32xf32>
    %142 = arith.mulf %137, %139 : vector<8x32xf32>
    %143 = arith.addf %141, %142 : vector<8x32xf32>
    %144 = math.tanh %143 : vector<8x32xf32>
    %145 = arith.mulf %140, %144 : vector<8x32xf32>
    %c4_i32_52 = arith.constant 4 : i32
    %146 = arith.muli %c1_i32_39, %c4_i32_52 : i32
    %c2_i32_53 = arith.constant 2 : i32
    %147 = arith.addi %146, %c2_i32_53 : i32
    %148 = arith.index_cast %147 : i32 to index
    %c0_54 = arith.constant 0 : index
    %c0_55 = arith.constant 0 : index
    %149 = vector.load %arg9[%148, %c0_54, %c0_55] : memref<8x8x128xf32, #tpu.memory_space<vmem>>, vector<1x8x128xf32>
    %150 = vector.shape_cast %149 : vector<1x8x128xf32> to vector<8x128xf32>
    %cst_56 = arith.constant dense<0.000000e+00> : vector<8x128xf32>
    %151 = tpu.matmul %145, %12, %cst_56 {dimension_numbers = #tpu.dot_dimension_numbers<[1], [0], [0], [1], [0, 0, 1, 1], [], []>} : vector<8x32xf32>, vector<32x128xf32>, vector<8x128xf32> -> vector<8x128xf32>
    %152 = arith.addf %150, %151 : vector<8x128xf32>
    %153 = arith.negf %152 : vector<8x128xf32>
    %154 = math.exp %153 : vector<8x128xf32>
    %cst_57 = arith.constant 1.000000e+00 : f32
    %155 = vector.broadcast %cst_57 : f32 to vector<8x128xf32>
    %156 = arith.addf %155, %154 : vector<8x128xf32>
    %157 = arith.divf %155, %156 : vector<8x128xf32>
    %158 = vector.extract_strided_slice %157 {offsets = [0, 0], sizes = [8, 32], strides = [1, 1]} : vector<8x128xf32> to vector<8x32xf32>
    %159 = vector.extract_strided_slice %157 {offsets = [0, 32], sizes = [8, 32], strides = [1, 1]} : vector<8x128xf32> to vector<8x32xf32>
    %160 = vector.extract_strided_slice %157 {offsets = [0, 64], sizes = [8, 32], strides = [1, 1]} : vector<8x128xf32> to vector<8x32xf32>
    %161 = vector.extract_strided_slice %157 {offsets = [0, 96], sizes = [8, 32], strides = [1, 1]} : vector<8x128xf32> to vector<8x32xf32>
    %162 = arith.mulf %159, %143 : vector<8x32xf32>
    %163 = arith.mulf %158, %160 : vector<8x32xf32>
    %164 = arith.addf %162, %163 : vector<8x32xf32>
    %165 = math.tanh %164 : vector<8x32xf32>
    %166 = arith.mulf %161, %165 : vector<8x32xf32>
    %c4_i32_58 = arith.constant 4 : i32
    %167 = arith.muli %c1_i32_39, %c4_i32_58 : i32
    %c3_i32_59 = arith.constant 3 : i32
    %168 = arith.addi %167, %c3_i32_59 : i32
    %169 = arith.index_cast %168 : i32 to index
    %c0_60 = arith.constant 0 : index
    %c0_61 = arith.constant 0 : index
    %170 = vector.load %arg9[%169, %c0_60, %c0_61] : memref<8x8x128xf32, #tpu.memory_space<vmem>>, vector<1x8x128xf32>
    %171 = vector.shape_cast %170 : vector<1x8x128xf32> to vector<8x128xf32>
    %cst_62 = arith.constant dense<0.000000e+00> : vector<8x128xf32>
    %172 = tpu.matmul %166, %12, %cst_62 {dimension_numbers = #tpu.dot_dimension_numbers<[1], [0], [0], [1], [0, 0, 1, 1], [], []>} : vector<8x32xf32>, vector<32x128xf32>, vector<8x128xf32> -> vector<8x128xf32>
    %173 = arith.addf %171, %172 : vector<8x128xf32>
    %174 = arith.negf %173 : vector<8x128xf32>
    %175 = math.exp %174 : vector<8x128xf32>
    %cst_63 = arith.constant 1.000000e+00 : f32
    %176 = vector.broadcast %cst_63 : f32 to vector<8x128xf32>
    %177 = arith.addf %176, %175 : vector<8x128xf32>
    %178 = arith.divf %176, %177 : vector<8x128xf32>
    %179 = vector.extract_strided_slice %178 {offsets = [0, 0], sizes = [8, 32], strides = [1, 1]} : vector<8x128xf32> to vector<8x32xf32>
    %180 = vector.extract_strided_slice %178 {offsets = [0, 32], sizes = [8, 32], strides = [1, 1]} : vector<8x128xf32> to vector<8x32xf32>
    %181 = vector.extract_strided_slice %178 {offsets = [0, 64], sizes = [8, 32], strides = [1, 1]} : vector<8x128xf32> to vector<8x32xf32>
    %182 = vector.extract_strided_slice %178 {offsets = [0, 96], sizes = [8, 32], strides = [1, 1]} : vector<8x128xf32> to vector<8x32xf32>
    %183 = arith.mulf %180, %164 : vector<8x32xf32>
    %184 = arith.mulf %179, %181 : vector<8x32xf32>
    %185 = arith.addf %183, %184 : vector<8x32xf32>
    %186 = math.tanh %185 : vector<8x32xf32>
    %187 = arith.mulf %182, %186 : vector<8x32xf32>
    %188 = tpu.concatenate %124, %145, %166, %187 in 1 : vector<8x32xf32>, vector<8x32xf32>, vector<8x32xf32>, vector<8x32xf32> -> vector<8x128xf32>
    %189 = arith.index_cast %c1_i32_39 : i32 to index
    %c0_64 = arith.constant 0 : index
    %c0_65 = arith.constant 0 : index
    %190 = vector.load %arg6[%189, %c0_64, %c0_65] : memref<2x8x128xf32, #tpu.memory_space<vmem>>, vector<1x8x128xf32>
    %191 = vector.shape_cast %190 : vector<1x8x128xf32> to vector<8x128xf32>
    %192 = vector.shape_cast %188 : vector<8x128xf32> to vector<1x8x128xf32>
    tpu.vector_store %arg6[%189, %c0_64, %c0_65], %192 {strides = array<i32>} : memref<2x8x128xf32, #tpu.memory_space<vmem>>, vector<1x8x128xf32>,
    %c2_i32_66 = arith.constant 2 : i32
    %c0_67 = arith.constant 0 : index
    %c0_68 = arith.constant 0 : index
    %193 = vector.load %arg10[%c0_67, %c0_68] : memref<8x32xf32, #tpu.memory_space<vmem>>, vector<8x32xf32>
    tpu.vector_store %arg10[%c0_67, %c0_68], %187 {strides = array<i32>} : memref<8x32xf32, #tpu.memory_space<vmem>>, vector<8x32xf32>,
    %c0_69 = arith.constant 0 : index
    %c0_70 = arith.constant 0 : index
    %194 = vector.load %arg11[%c0_69, %c0_70] : memref<8x32xf32, #tpu.memory_space<vmem>>, vector<8x32xf32>
    tpu.vector_store %arg11[%c0_69, %c0_70], %185 {strides = array<i32>} : memref<8x32xf32, #tpu.memory_space<vmem>>, vector<8x32xf32>,
    %c0_i32_71 = arith.constant 0 : i32
    %195 = arith.cmpi eq, %arg1, %c0_i32_71 : i32
    %196 = arith.extui %195 : i1 to i32
    %c0_i32_72 = arith.constant 0 : i32
    %197 = arith.cmpi ne, %196, %c0_i32_72 : i32
    scf.if %197 {
      %c0_73 = arith.constant 0 : index
      %c0_74 = arith.constant 0 : index
      %198 = vector.load %arg7[%c0_73, %c0_74] : memref<8x32xf32, #tpu.memory_space<vmem>>, vector<8x32xf32>
      tpu.vector_store %arg7[%c0_73, %c0_74], %187 {strides = array<i32>} : memref<8x32xf32, #tpu.memory_space<vmem>>, vector<8x32xf32>,
      %c0_75 = arith.constant 0 : index
      %c0_76 = arith.constant 0 : index
      %199 = vector.load %arg8[%c0_75, %c0_76] : memref<8x32xf32, #tpu.memory_space<vmem>>, vector<8x32xf32>
      tpu.vector_store %arg8[%c0_75, %c0_76], %185 {strides = array<i32>} : memref<8x32xf32, #tpu.memory_space<vmem>>, vector<8x32xf32>,
    } else {
    }
    return
  }
  func.func @transform_0(%arg0: i32, %arg1: i32) -> (i32, i32, i32) {
    %c0_i32 = arith.constant 0 : i32
    %c0_i32_0 = arith.constant 0 : i32
    return %arg1, %arg0, %c0_i32 : i32, i32, i32
  }
  func.func @transform_1(%arg0: i32, %arg1: i32) -> (i32, i32) {
    %c0_i32 = arith.constant 0 : i32
    %c0_i32_0 = arith.constant 0 : i32
    %c0_i32_1 = arith.constant 0 : i32
    return %c0_i32, %c0_i32_0 : i32, i32
  }
  func.func @transform_2(%arg0: i32, %arg1: i32) -> (i32, i32) {
    %c0_i32 = arith.constant 0 : i32
    %c0_i32_0 = arith.constant 0 : i32
    %c0_i32_1 = arith.constant 0 : i32
    return %c0_i32, %c0_i32_0 : i32, i32
  }
  func.func @transform_3(%arg0: i32, %arg1: i32) -> (i32, i32) {
    %c0_i32 = arith.constant 0 : i32
    %c0_i32_0 = arith.constant 0 : i32
    %c0_i32_1 = arith.constant 0 : i32
    return %c0_i32, %c0_i32_0 : i32, i32
  }
  func.func @transform_4(%arg0: i32, %arg1: i32) -> (i32, i32, i32) {
    %c0_i32 = arith.constant 0 : i32
    %c0_i32_0 = arith.constant 0 : i32
    return %arg1, %arg0, %c0_i32 : i32, i32, i32
  }
  func.func @transform_5(%arg0: i32, %arg1: i32) -> (i32, i32) {
    %c0_i32 = arith.constant 0 : i32
    %c0_i32_0 = arith.constant 0 : i32
    return %arg0, %c0_i32 : i32, i32
  }
  func.func @transform_6(%arg0: i32, %arg1: i32) -> (i32, i32) {
    %c0_i32 = arith.constant 0 : i32
    %c0_i32_0 = arith.constant 0 : i32
    return %arg0, %c0_i32 : i32, i32
  }
}

</mosaic_0001>

<llo_original>
// kernel: tpu_custom_call.1
$region0: #{tpu_custom_call.1}
  #allocation0 [shape = 'u32[]', space=smem, size = 0x4, offset = 0x4, fixed_abs, tag = 'smem constant byte address 0x4 - core index']
  #allocation1 [shape = 'u32[72,128]{1,0:T(1,128)}', space=vmem, size = 0x9000, scoped, tag = 'internal scratch']
  #allocation2 [shape = 'f32[8,8,128]{2,1,0:T(8,128)}', space=vmem, size = 0x8000, scoped, tag = 'scratch operand']
  #allocation3 [shape = 'f32[8,32]{1,0:T(8,128)}', space=vmem, size = 0x1000, scoped, tag = 'scratch operand']
  #allocation4 [shape = 'f32[8,32]{1,0:T(8,128)}', space=vmem, size = 0x1000, scoped, tag = 'scratch operand']
  %s0 = inlined_call_operand.hbm [shape: f32[8,8,16], index: 0, kind: input, shape index: {}]
  %s1 = inlined_call_operand.hbm [shape: f32[16,128], index: 1, kind: input, shape index: {}]
  %s2 = inlined_call_operand.hbm [shape: f32[32,128], index: 2, kind: input, shape index: {}]
  %s3 = inlined_call_operand.vmem [shape: f32[1,128], index: 3, kind: input, shape index: {}]
  %s4 = inlined_call_operand.hbm [shape: f32[2,8,128], index: 4, kind: output, shape index: {0}]
  %s5 = inlined_call_operand.hbm [shape: f32[8,32], index: 5, kind: output, shape index: {1}]
  %s6 = inlined_call_operand.hbm [shape: f32[8,32], index: 6, kind: output, shape index: {2}]
  %7 = xla_tuple %s4, %s5, %s6
  %s8 = sld [smem:[#allocation0]]
  $region62: #{tpu_custom_call.1} parent=0
    _
  %s10 = ssub.s32 1, %s8
  %s11 = scalar_select 0, %s10, %s8
  $region1: #{tpu_custom_call.1} parent=0
    #allocation5 [shape = 'u8[32768]{0}', space=vmem, size = 0x8000, scoped, tag = 'input window, operand 0, single buffered']
    #allocation6 [shape = 's32[1]{0}', space=sflag, size = 0x4, scoped, tag = 'scoped memory for tpu_custom_call.1']
    #allocation7 [shape = 's32[1]{0}', space=sflag, size = 0x4, scoped, tag = 'scoped memory for tpu_custom_call.1']
    #allocation8 [shape = 'u8[8192]{0}', space=vmem, size = 0x2000, scoped, tag = 'input window, operand 1, single buffered']
    #allocation9 [shape = 's32[1]{0}', space=sflag, size = 0x4, scoped, tag = 'scoped memory for tpu_custom_call.1']
    #allocation10 [shape = 'u8[16384]{0}', space=vmem, size = 0x4000, scoped, tag = 'input window, operand 2, single buffered']
    #allocation11 [shape = 'u8[8192]{0}', space=vmem, size = 0x2000, scoped, tag = 'output window, operand 0, single buffered']
    #allocation12 [shape = 'u8[4096]{0}', space=vmem, size = 0x1000, scoped, tag = 'output window, operand 1, single buffered']
    #allocation13 [shape = 's32[1]{0}', space=sflag, size = 0x4, scoped, tag = 'scoped memory for tpu_custom_call.1']
    #allocation14 [shape = 'u8[4096]{0}', space=vmem, size = 0x1000, scoped, tag = 'output window, operand 2, single buffered']
    %12 = vsyncpa [#allocation6], 0
    %13 = vsyncpa [#allocation9], 0
    %14 = vsyncpa [#allocation7], 0
    %15 = vsyncpa [#allocation13], 0
    // Predicated region
    $region2: #{tpu_custom_call.1} parent=1 // pred_check
      _
    $region3: #{tpu_custom_call.1} parent=1 // pred_check_branch
      %17 = sbr.rel (0) target = $region5
    $region4: #{tpu_custom_call.1} parent=1 // pred_region
      %19 = vsyncadd [#allocation6], 0
      %s20 = sshll.u32 %s0, 4
      %s21 = int_to_ptr.hbm [resolvable:$true] %s20
      %s22 = sshll.u32 [#allocation5], 4
      %s23 = int_to_ptr.vmem [resolvable:$true] %s22
      %28 = dma.hbm_to_vmem [thread:$0]  %s21, 1024, %s23, [#allocation6], 128, 128, 8
    $region5: #{tpu_custom_call.1} parent=1 // pred_fallthru
      _
    // Predicated region
    $region6: #{tpu_custom_call.1} parent=1 // pred_check
      _
    $region7: #{tpu_custom_call.1} parent=1 // pred_check_branch
      %30 = sbr.rel (0) target = $region9
    $region8: #{tpu_custom_call.1} parent=1 // pred_region
      %32 = vsyncadd [#allocation9], 0
      %s33 = sshll.u32 %s1, 4
      %s34 = int_to_ptr.hbm [resolvable:$true] %s33
      %s35 = sshll.u32 [#allocation8], 4
      %s36 = int_to_ptr.vmem [resolvable:$true] %s35
      %41 = dma.hbm_to_vmem [thread:$0]  %s34, 256, %s36, [#allocation9], 128, 128, 8
    $region9: #{tpu_custom_call.1} parent=1 // pred_fallthru
      _
    // Predicated region
    $region10: #{tpu_custom_call.1} parent=1 // pred_check
      _
    $region11: #{tpu_custom_call.1} parent=1 // pred_check_branch
      %43 = sbr.rel (0) target = $region13
    $region12: #{tpu_custom_call.1} parent=1 // pred_region
      %45 = vsyncadd [#allocation9], 0
      %s46 = sshll.u32 %s2, 4
      %s47 = int_to_ptr.hbm [resolvable:$true] %s46
      %s48 = sshll.u32 [#allocation10], 4
      %s49 = int_to_ptr.vmem [resolvable:$true] %s48
      %54 = dma.hbm_to_vmem [thread:$0]  %s47, 512, %s49, [#allocation9], 128, 128, 8
    $region13: #{tpu_custom_call.1} parent=1 // pred_fallthru
      _
    // Predicated region
    $region14: #{tpu_custom_call.1} parent=1 // pred_check
      _
    $region15: #{tpu_custom_call.1} parent=1 // pred_check_branch
      %56 = sbr.rel (0) target = $region17
    $region16: #{tpu_custom_call.1} parent=1 // pred_region
      _
    $region17: #{tpu_custom_call.1} parent=1 // pred_fallthru
      _
    // Predicated region
    $region18: #{tpu_custom_call.1} parent=1 // pred_check
      _
    $region19: #{tpu_custom_call.1} parent=1 // pred_check_branch
      %58 = sbr.rel (0) target = $region21
    $region20: #{tpu_custom_call.1} parent=1 // pred_region
      %60 = dma.done [#allocation6], 1024
    $region21: #{tpu_custom_call.1} parent=1 // pred_fallthru
      _
    // Predicated region
    $region22: #{tpu_custom_call.1} parent=1 // pred_check
      _
    $region23: #{tpu_custom_call.1} parent=1 // pred_check_branch
      %62 = sbr.rel (0) target = $region25
    $region24: #{tpu_custom_call.1} parent=1 // pred_region
      %64 = dma.done [#allocation9], 256
    $region25: #{tpu_custom_call.1} parent=1 // pred_fallthru
      _
    // Predicated region
    $region26: #{tpu_custom_call.1} parent=1 // pred_check
      _
    $region27: #{tpu_custom_call.1} parent=1 // pred_check_branch
      %66 = sbr.rel (0) target = $region29
    $region28: #{tpu_custom_call.1} parent=1 // pred_region
      %68 = dma.done [#allocation9], 512
    $region29: #{tpu_custom_call.1} parent=1 // pred_fallthru
      _
    %p69 = scmp.eq.s32.totalorder 0, 0
    // Predicated region
    $region30: #{tpu_custom_call.1} parent=1 // pred_check
      %p70 = pneg %p69
    $region31: #{tpu_custom_call.1} parent=1 // pred_check_branch
      %72 = sbr.rel (%p70) target = $region33
    $region32: #{tpu_custom_call.1} parent=1 // pred_region
      %vm73 = vcmask 261120
      %74 = vst.msk [vmem:[#allocation3] sm:$0xff] %vm73, 0.0
      %75 = vst.msk [vmem:[#allocation4] sm:$0xff] %vm73, 0.0
    $region33: #{tpu_custom_call.1} parent=1 // pred_fallthru
      _
    %v76 = vld [vmem:[#allocation5] sm:$0xff]
    %v77 = vld [vmem:[#allocation5 + $0x8] sm:$0xff]
    %v78 = vld [vmem:[#allocation5 + $0x10] sm:$0xff]
    %v79 = vld [vmem:[#allocation5 + $0x18] sm:$0xff]
    %v80 = vld [vmem:[#allocation5 + $0x20] sm:$0xff]
    %v81 = vld [vmem:[#allocation5 + $0x28] sm:$0xff]
    %v82 = vld [vmem:[#allocation5 + $0x30] sm:$0xff]
    %v83 = vld [vmem:[#allocation5 + $0x38] sm:$0xff]
    %v84 = vld [vmem:[#allocation8] sm:$0xff]
    %v85 = vld [vmem:[#allocation8 + $0x8] sm:$0xff]
    %v86 = vld [vmem:[%s3] sm:$0x1]
    %v88 = vperm.slane %v86, 0
    %vm90 = vcmask 130048
    %v92 = vsel %vm90, %v76, 0
    %v95 = vsel %vm90, %v77, 0
    %v98 = vsel %vm90, %v78, 0
    %v101 = vsel %vm90, %v79, 0
    %v104 = vsel %vm90, %v80, 0
    %v107 = vsel %vm90, %v81, 0
    %v110 = vsel %vm90, %v82, 0
    %v113 = vsel %vm90, %v83, 0
    %115 = vmatpush.msra.mxu0 0.0
    %116 = vmatpush.msra.mxu0 0.0
    %117 = vmatpush.msra.mxu0 0.0
    %118 = vmatpush.msra.mxu0 0.0
    %119 = vmatpush.msra.mxu0 0.0
    %120 = vmatpush.msra.mxu0 0.0
    %121 = vmatpush.msra.mxu0 0.0
    %122 = vmatpush.msra.mxu0 0.0
    %123 = vmatpush.msra.mxu0 0.0
    %124 = vmatpush.msra.mxu0 0.0
    %125 = vmatpush.msra.mxu0 0.0
    %126 = vmatpush.msra.mxu0 0.0
    %127 = vmatpush.msra.mxu0 0.0
    %128 = vmatpush.msra.mxu0 0.0
    %129 = vmatpush.msra.mxu0 %v85
    %130 = vmatpush.msra.mxu0 %v84
    %131 = vmatmul.f32.gmra.mxu0 %v92
    %v132 = vpop.f32.mrf.mxu0
    %v133 = vadd.f32 %v88, %v132
    %134 = vmatmul.f32.gmra.mxu0 %v95
    %v135 = vpop.f32.mrf.mxu0
    %v136 = vadd.f32 %v88, %v135
    %137 = vmatmul.f32.gmra.mxu0 %v98
    %v138 = vpop.f32.mrf.mxu0
    %v139 = vadd.f32 %v88, %v138
    %140 = vmatmul.f32.gmra.mxu0 %v101
    %v141 = vpop.f32.mrf.mxu0
    %v142 = vadd.f32 %v88, %v141
    %143 = vmatmul.f32.gmra.mxu0 %v104
    %v144 = vpop.f32.mrf.mxu0
    %v145 = vadd.f32 %v88, %v144
    %146 = vmatmul.f32.gmra.mxu0 %v107
    %v147 = vpop.f32.mrf.mxu0
    %v148 = vadd.f32 %v88, %v147
    %149 = vmatmul.f32.gmra.mxu0 %v110
    %v150 = vpop.f32.mrf.mxu0
    %v151 = vadd.f32 %v88, %v150
    %152 = vmatmul.f32.gmra.mxu0 %v113
    %v153 = vpop.f32.mrf.mxu0
    %v154 = vadd.f32 %v88, %v153
    %155 = vdwg.mxu0
    %156 = vst [vmem:[#allocation2] sm:$0xff] %v133
    %157 = vst [vmem:[#allocation2 + $0x8] sm:$0xff] %v136
    %158 = vst [vmem:[#allocation2 + $0x10] sm:$0xff] %v139
    %159 = vst [vmem:[#allocation2 + $0x18] sm:$0xff] %v142
    %160 = vst [vmem:[#allocation2 + $0x20] sm:$0xff] %v145
    %161 = vst [vmem:[#allocation2 + $0x28] sm:$0xff] %v148
    %162 = vst [vmem:[#allocation2 + $0x30] sm:$0xff] %v151
    %163 = vst [vmem:[#allocation2 + $0x38] sm:$0xff] %v154
    %v164 = vld [vmem:[#allocation10] sm:$0xff]
    %v165 = vld [vmem:[#allocation10 + $0x8] sm:$0xff]
    %v166 = vld [vmem:[#allocation10 + $0x10] sm:$0xff]
    %v167 = vld [vmem:[#allocation10 + $0x18] sm:$0xff]
    %v168 = vld [vmem:[#allocation3] sm:$0xff]
    %v169 = vld [vmem:[#allocation4] sm:$0xff]
    %v170 = vld [vmem:[#allocation2] sm:$0xff]
    %vm171 = vcmask 261120
    %v173 = vsel %vm171, %v168, 0
    %175 = vmatpush.msra.mxu0 0.0
    %176 = vmatpush.msra.mxu0 0.0
    %177 = vmatpush.msra.mxu0 0.0
    %178 = vmatpush.msra.mxu0 0.0
    %179 = vmatpush.msra.mxu0 0.0
    %180 = vmatpush.msra.mxu0 0.0
    %181 = vmatpush.msra.mxu0 0.0
    %182 = vmatpush.msra.mxu0 0.0
    %183 = vmatpush.msra.mxu0 0.0
    %184 = vmatpush.msra.mxu0 0.0
    %185 = vmatpush.msra.mxu0 0.0
    %186 = vmatpush.msra.mxu0 0.0
    %187 = vmatpush.msra.mxu0 %v167
    %188 = vmatpush.msra.mxu0 %v166
    %189 = vmatpush.msra.mxu0 %v165
    %190 = vmatpush.msra.mxu0 %v164
    %191 = vmatmul.f32.gmra.mxu0 %v173
    %v192 = vpop.f32.mrf.mxu0
    %v193 = vadd.f32 0.0, %v192
    %194 = vdwg.mxu0
    %v195 = vadd.f32 %v170, %v193
    %v196 = vxor.u32 %v195, 2147483648
    %v197 = vmul.f32 %v196, 1.442695
    %v198 = vpow.pop %v197
    %v199 = vadd.f32 %v198, 1.0
    %v200 = vrcp.pop %v199
    %v201 = vmul.f32 %v199, %v200
    %v202 = vsub.f32 1.0, %v201
    %v203 = vmul.f32 %v200, %v202
    %v204 = vadd.f32 %v200, %v203
    %vm205 = vweird.f32 %v199
    %vm206 = vweird.f32 %v200
    %vm207 = vmor %vm205, %vm206
    %v208 = vsel %vm207, %v200, %v204
    %v209 = vand.u32 2147483647, %v199
    %vm210 = vcmp.eq.f32.partialorder %v209, 8.507059e+37
    %v211 = vand.u32 %v199, 2147483648
    %v212 = vor.u32 1.1754944e-38, %v211
    %v213 = vsel %vm210, %v212, %v208
    %v214 = vmul.f32 1.0, %v213
    %216 = vrot.lane.b32.xlu0 %v169, 32
    %v217 = vpop.permute.xlu0 %216
    %v219 = vmul.f32 %v214, %v217
    %221 = vrot.lane.b32.xlu0 %v214, 64
    %v222 = vpop.permute.xlu0 %221
    %v224 = vmul.f32 %v214, %v222
    %226 = vrot.lane.b32.xlu0 %v224, 32
    %v227 = vpop.permute.xlu0 %226
    %v229 = vadd.f32 %v219, %v227
    %v230 = vtanh.pop %v229
    %232 = vrot.lane.b32.xlu0 %v230, 64
    %v233 = vpop.permute.xlu0 %232
    %v235 = vmul.f32 %v214, %v233
    %s236 = scalar_lea.vmem [#allocation2], 8
    %v237 = vld [vmem:[%s236] sm:$0xff]
    %239 = vrot.lane.b32.xlu0 %v235, 32
    %v240 = vpop.permute.xlu0 %239
    %v241 = vsel %vm171, %v240, 0
    %243 = vmatpush.msra.mxu0 0.0
    %244 = vmatpush.msra.mxu0 0.0
    %245 = vmatpush.msra.mxu0 0.0
    %246 = vmatpush.msra.mxu0 0.0
    %247 = vmatpush.msra.mxu0 0.0
    %248 = vmatpush.msra.mxu0 0.0
    %249 = vmatpush.msra.mxu0 0.0
    %250 = vmatpush.msra.mxu0 0.0
    %251 = vmatpush.msra.mxu0 0.0
    %252 = vmatpush.msra.mxu0 0.0
    %253 = vmatpush.msra.mxu0 0.0
    %254 = vmatpush.msra.mxu0 0.0
    %255 = vmatpush.msra.mxu0 %v167
    %256 = vmatpush.msra.mxu0 %v166
    %257 = vmatpush.msra.mxu0 %v165
    %258 = vmatpush.msra.mxu0 %v164
    %259 = vmatmul.f32.gmra.mxu0 %v241
    %v260 = vpop.f32.mrf.mxu0
    %v261 = vadd.f32 0.0, %v260
    %262 = vdwg.mxu0
    %v263 = vadd.f32 %v237, %v261
    %v264 = vxor.u32 %v263, 2147483648
    %v265 = vmul.f32 %v264, 1.442695
    %v266 = vpow.pop %v265
    %v267 = vadd.f32 %v266, 1.0
    %v268 = vrcp.pop %v267
    %v269 = vmul.f32 %v267, %v268
    %v270 = vsub.f32 1.0, %v269
    %v271 = vmul.f32 %v268, %v270
    %v272 = vadd.f32 %v268, %v271
    %vm273 = vweird.f32 %v267
    %vm274 = vweird.f32 %v268
    %vm275 = vmor %vm273, %vm274
    %v276 = vsel %vm275, %v268, %v272
    %v277 = vand.u32 2147483647, %v267
    %vm278 = vcmp.eq.f32.partialorder %v277, 8.507059e+37
    %v279 = vand.u32 %v267, 2147483648
    %v280 = vor.u32 1.1754944e-38, %v279
    %v281 = vsel %vm278, %v280, %v276
    %v282 = vmul.f32 1.0, %v281
    %v283 = vmul.f32 %v282, %v229
    %285 = vrot.lane.b32.xlu0 %v282, 64
    %v286 = vpop.permute.xlu0 %285
    %v288 = vmul.f32 %v282, %v286
    %290 = vrot.lane.b32.xlu0 %v288, 32
    %v291 = vpop.permute.xlu0 %290
    %v293 = vadd.f32 %v283, %v291
    %v294 = vtanh.pop %v293
    %296 = vrot.lane.b32.xlu0 %v294, 64
    %v297 = vpop.permute.xlu0 %296
    %v299 = vmul.f32 %v282, %v297
    %s300 = scalar_lea.vmem [#allocation2], 16
    %v301 = vld [vmem:[%s300] sm:$0xff]
    %303 = vrot.lane.b32.xlu0 %v299, 32
    %v304 = vpop.permute.xlu0 %303
    %v305 = vsel %vm171, %v304, 0
    %307 = vmatpush.msra.mxu0 0.0
    %308 = vmatpush.msra.mxu0 0.0
    %309 = vmatpush.msra.mxu0 0.0
    %310 = vmatpush.msra.mxu0 0.0
    %311 = vmatpush.msra.mxu0 0.0
    %312 = vmatpush.msra.mxu0 0.0
    %313 = vmatpush.msra.mxu0 0.0
    %314 = vmatpush.msra.mxu0 0.0
    %315 = vmatpush.msra.mxu0 0.0
    %316 = vmatpush.msra.mxu0 0.0
    %317 = vmatpush.msra.mxu0 0.0
    %318 = vmatpush.msra.mxu0 0.0
    %319 = vmatpush.msra.mxu0 %v167
    %320 = vmatpush.msra.mxu0 %v166
    %321 = vmatpush.msra.mxu0 %v165
    %322 = vmatpush.msra.mxu0 %v164
    %323 = vmatmul.f32.gmra.mxu0 %v305
    %v324 = vpop.f32.mrf.mxu0
    %v325 = vadd.f32 0.0, %v324
    %326 = vdwg.mxu0
    %v327 = vadd.f32 %v301, %v325
    %v328 = vxor.u32 %v327, 2147483648
    %v329 = vmul.f32 %v328, 1.442695
    %v330 = vpow.pop %v329
    %v331 = vadd.f32 %v330, 1.0
    %v332 = vrcp.pop %v331
    %v333 = vmul.f32 %v331, %v332
    %v334 = vsub.f32 1.0, %v333
    %v335 = vmul.f32 %v332, %v334
    %v336 = vadd.f32 %v332, %v335
    %vm337 = vweird.f32 %v331
    %vm338 = vweird.f32 %v332
    %vm339 = vmor %vm337, %vm338
    %v340 = vsel %vm339, %v332, %v336
    %v341 = vand.u32 2147483647, %v331
    %vm342 = vcmp.eq.f32.partialorder %v341, 8.507059e+37
    %v343 = vand.u32 %v331, 2147483648
    %v344 = vor.u32 1.1754944e-38, %v343
    %v345 = vsel %vm342, %v344, %v340
    %v346 = vmul.f32 1.0, %v345
    %v347 = vmul.f32 %v346, %v293
    %349 = vrot.lane.b32.xlu0 %v346, 64
    %v350 = vpop.permute.xlu0 %349
    %v352 = vmul.f32 %v346, %v350
    %354 = vrot.lane.b32.xlu0 %v352, 32
    %v355 = vpop.permute.xlu0 %354
    %v357 = vadd.f32 %v347, %v355
    %v358 = vtanh.pop %v357
    %360 = vrot.lane.b32.xlu0 %v358, 64
    %v361 = vpop.permute.xlu0 %360
    %v363 = vmul.f32 %v346, %v361
    %s364 = scalar_lea.vmem [#allocation2], 24
    %v365 = vld [vmem:[%s364] sm:$0xff]
    %367 = vrot.lane.b32.xlu0 %v363, 32
    %v368 = vpop.permute.xlu0 %367
    %v369 = vsel %vm171, %v368, 0
    %371 = vmatpush.msra.mxu0 0.0
    %372 = vmatpush.msra.mxu0 0.0
    %373 = vmatpush.msra.mxu0 0.0
    %374 = vmatpush.msra.mxu0 0.0
    %375 = vmatpush.msra.mxu0 0.0
    %376 = vmatpush.msra.mxu0 0.0
    %377 = vmatpush.msra.mxu0 0.0
    %378 = vmatpush.msra.mxu0 0.0
    %379 = vmatpush.msra.mxu0 0.0
    %380 = vmatpush.msra.mxu0 0.0
    %381 = vmatpush.msra.mxu0 0.0
    %382 = vmatpush.msra.mxu0 0.0
    %383 = vmatpush.msra.mxu0 %v167
    %384 = vmatpush.msra.mxu0 %v166
    %385 = vmatpush.msra.mxu0 %v165
    %386 = vmatpush.msra.mxu0 %v164
    %387 = vmatmul.f32.gmra.mxu0 %v369
    %v388 = vpop.f32.mrf.mxu0
    %v389 = vadd.f32 0.0, %v388
    %390 = vdwg.mxu0
    %v391 = vadd.f32 %v365, %v389
    %v392 = vxor.u32 %v391, 2147483648
    %v393 = vmul.f32 %v392, 1.442695
    %v394 = vpow.pop %v393
    %v395 = vadd.f32 %v394, 1.0
    %v396 = vrcp.pop %v395
    %v397 = vmul.f32 %v395, %v396
    %v398 = vsub.f32 1.0, %v397
    %v399 = vmul.f32 %v396, %v398
    %v400 = vadd.f32 %v396, %v399
    %vm401 = vweird.f32 %v395
    %vm402 = vweird.f32 %v396
    %vm403 = vmor %vm401, %vm402
    %v404 = vsel %vm403, %v396, %v400
    %v405 = vand.u32 2147483647, %v395
    %vm406 = vcmp.eq.f32.partialorder %v405, 8.507059e+37
    %v407 = vand.u32 %v395, 2147483648
    %v408 = vor.u32 1.1754944e-38, %v407
    %v409 = vsel %vm406, %v408, %v404
    %v410 = vmul.f32 1.0, %v409
    %v411 = vmul.f32 %v410, %v357
    %413 = vrot.lane.b32.xlu0 %v410, 64
    %v414 = vpop.permute.xlu0 %413
    %v416 = vmul.f32 %v410, %v414
    %418 = vrot.lane.b32.xlu0 %v416, 32
    %v419 = vpop.permute.xlu0 %418
    %v421 = vadd.f32 %v411, %v419
    %v422 = vtanh.pop %v421
    %424 = vrot.lane.b32.xlu0 %v422, 64
    %v425 = vpop.permute.xlu0 %424
    %v427 = vmul.f32 %v410, %v425
    %429 = vrot.lane.b32.xlu0 %v299, 64
    %v430 = vpop.permute.xlu0 %429
    %432 = vrot.lane.b32.xlu0 %v363, 96
    %v433 = vpop.permute.xlu0 %432
    %v435 = vsel %vm171, %v240, %v430
    %vm436 = vcmask 523264
    %v437 = vsel %vm436, %v435, %v433
    %vm438 = vcmask 785408
    %v439 = vsel %vm438, %v437, %v427
    %440 = vst [vmem:[#allocation11] sm:$0xff] %v439
    %s441 = scalar_lea.vmem [#allocation2], 32
    %v442 = vld [vmem:[%s441] sm:$0xff]
    %444 = vrot.lane.b32.xlu0 %v427, 32
    %v445 = vpop.permute.xlu0 %444
    %v446 = vsel %vm171, %v445, 0
    %448 = vmatpush.msra.mxu0 0.0
    %449 = vmatpush.msra.mxu0 0.0
    %450 = vmatpush.msra.mxu0 0.0
    %451 = vmatpush.msra.mxu0 0.0
    %452 = vmatpush.msra.mxu0 0.0
    %453 = vmatpush.msra.mxu0 0.0
    %454 = vmatpush.msra.mxu0 0.0
    %455 = vmatpush.msra.mxu0 0.0
    %456 = vmatpush.msra.mxu0 0.0
    %457 = vmatpush.msra.mxu0 0.0
    %458 = vmatpush.msra.mxu0 0.0
    %459 = vmatpush.msra.mxu0 0.0
    %460 = vmatpush.msra.mxu0 %v167
    %461 = vmatpush.msra.mxu0 %v166
    %462 = vmatpush.msra.mxu0 %v165
    %463 = vmatpush.msra.mxu0 %v164
    %464 = vmatmul.f32.gmra.mxu0 %v446
    %v465 = vpop.f32.mrf.mxu0
    %v466 = vadd.f32 0.0, %v465
    %467 = vdwg.mxu0
    %v468 = vadd.f32 %v442, %v466
    %v469 = vxor.u32 %v468, 2147483648
    %v470 = vmul.f32 %v469, 1.442695
    %v471 = vpow.pop %v470
    %v472 = vadd.f32 %v471, 1.0
    %v473 = vrcp.pop %v472
    %v474 = vmul.f32 %v472, %v473
    %v475 = vsub.f32 1.0, %v474
    %v476 = vmul.f32 %v473, %v475
    %v477 = vadd.f32 %v473, %v476
    %vm478 = vweird.f32 %v472
    %vm479 = vweird.f32 %v473
    %vm480 = vmor %vm478, %vm479
    %v481 = vsel %vm480, %v473, %v477
    %v482 = vand.u32 2147483647, %v472
    %vm483 = vcmp.eq.f32.partialorder %v482, 8.507059e+37
    %v484 = vand.u32 %v472, 2147483648
    %v485 = vor.u32 1.1754944e-38, %v484
    %v486 = vsel %vm483, %v485, %v481
    %v487 = vmul.f32 1.0, %v486
    %v488 = vmul.f32 %v487, %v421
    %490 = vrot.lane.b32.xlu0 %v487, 64
    %v491 = vpop.permute.xlu0 %490
    %v493 = vmul.f32 %v487, %v491
    %495 = vrot.lane.b32.xlu0 %v493, 32
    %v496 = vpop.permute.xlu0 %495
    %v498 = vadd.f32 %v488, %v496
    %v499 = vtanh.pop %v498
    %501 = vrot.lane.b32.xlu0 %v499, 64
    %v502 = vpop.permute.xlu0 %501
    %v504 = vmul.f32 %v487, %v502
    %s505 = scalar_lea.vmem [#allocation2], 40
    %v506 = vld [vmem:[%s505] sm:$0xff]
    %508 = vrot.lane.b32.xlu0 %v504, 32
    %v509 = vpop.permute.xlu0 %508
    %v510 = vsel %vm171, %v509, 0
    %512 = vmatpush.msra.mxu0 0.0
    %513 = vmatpush.msra.mxu0 0.0
    %514 = vmatpush.msra.mxu0 0.0
    %515 = vmatpush.msra.mxu0 0.0
    %516 = vmatpush.msra.mxu0 0.0
    %517 = vmatpush.msra.mxu0 0.0
    %518 = vmatpush.msra.mxu0 0.0
    %519 = vmatpush.msra.mxu0 0.0
    %520 = vmatpush.msra.mxu0 0.0
    %521 = vmatpush.msra.mxu0 0.0
    %522 = vmatpush.msra.mxu0 0.0
    %523 = vmatpush.msra.mxu0 0.0
    %524 = vmatpush.msra.mxu0 %v167
    %525 = vmatpush.msra.mxu0 %v166
    %526 = vmatpush.msra.mxu0 %v165
    %527 = vmatpush.msra.mxu0 %v164
    %528 = vmatmul.f32.gmra.mxu0 %v510
    %v529 = vpop.f32.mrf.mxu0
    %v530 = vadd.f32 0.0, %v529
    %531 = vdwg.mxu0
    %v532 = vadd.f32 %v506, %v530
    %v533 = vxor.u32 %v532, 2147483648
    %v534 = vmul.f32 %v533, 1.442695
    %v535 = vpow.pop %v534
    %v536 = vadd.f32 %v535, 1.0
    %v537 = vrcp.pop %v536
    %v538 = vmul.f32 %v536, %v537
    %v539 = vsub.f32 1.0, %v538
    %v540 = vmul.f32 %v537, %v539
    %v541 = vadd.f32 %v537, %v540
    %vm542 = vweird.f32 %v536
    %vm543 = vweird.f32 %v537
    %vm544 = vmor %vm542, %vm543
    %v545 = vsel %vm544, %v537, %v541
    %v546 = vand.u32 2147483647, %v536
    %vm547 = vcmp.eq.f32.partialorder %v546, 8.507059e+37
    %v548 = vand.u32 %v536, 2147483648
    %v549 = vor.u32 1.1754944e-38, %v548
    %v550 = vsel %vm547, %v549, %v545
    %v551 = vmul.f32 1.0, %v550
    %v552 = vmul.f32 %v551, %v498
    %554 = vrot.lane.b32.xlu0 %v551, 64
    %v555 = vpop.permute.xlu0 %554
    %v557 = vmul.f32 %v551, %v555
    %559 = vrot.lane.b32.xlu0 %v557, 32
    %v560 = vpop.permute.xlu0 %559
    %v562 = vadd.f32 %v552, %v560
    %v563 = vtanh.pop %v562
    %565 = vrot.lane.b32.xlu0 %v563, 64
    %v566 = vpop.permute.xlu0 %565
    %v568 = vmul.f32 %v551, %v566
    %s569 = scalar_lea.vmem [#allocation2], 48
    %v570 = vld [vmem:[%s569] sm:$0xff]
    %572 = vrot.lane.b32.xlu0 %v568, 32
    %v573 = vpop.permute.xlu0 %572
    %v574 = vsel %vm171, %v573, 0
    %576 = vmatpush.msra.mxu0 0.0
    %577 = vmatpush.msra.mxu0 0.0
    %578 = vmatpush.msra.mxu0 0.0
    %579 = vmatpush.msra.mxu0 0.0
    %580 = vmatpush.msra.mxu0 0.0
    %581 = vmatpush.msra.mxu0 0.0
    %582 = vmatpush.msra.mxu0 0.0
    %583 = vmatpush.msra.mxu0 0.0
    %584 = vmatpush.msra.mxu0 0.0
    %585 = vmatpush.msra.mxu0 0.0
    %586 = vmatpush.msra.mxu0 0.0
    %587 = vmatpush.msra.mxu0 0.0
    %588 = vmatpush.msra.mxu0 %v167
    %589 = vmatpush.msra.mxu0 %v166
    %590 = vmatpush.msra.mxu0 %v165
    %591 = vmatpush.msra.mxu0 %v164
    %592 = vmatmul.f32.gmra.mxu0 %v574
    %v593 = vpop.f32.mrf.mxu0
    %v594 = vadd.f32 0.0, %v593
    %595 = vdwg.mxu0
    %v596 = vadd.f32 %v570, %v594
    %v597 = vxor.u32 %v596, 2147483648
    %v598 = vmul.f32 %v597, 1.442695
    %v599 = vpow.pop %v598
    %v600 = vadd.f32 %v599, 1.0
    %v601 = vrcp.pop %v600
    %v602 = vmul.f32 %v600, %v601
    %v603 = vsub.f32 1.0, %v602
    %v604 = vmul.f32 %v601, %v603
    %v605 = vadd.f32 %v601, %v604
    %vm606 = vweird.f32 %v600
    %vm607 = vweird.f32 %v601
    %vm608 = vmor %vm606, %vm607
    %v609 = vsel %vm608, %v601, %v605
    %v610 = vand.u32 2147483647, %v600
    %vm611 = vcmp.eq.f32.partialorder %v610, 8.507059e+37
    %v612 = vand.u32 %v600, 2147483648
    %v613 = vor.u32 1.1754944e-38, %v612
    %v614 = vsel %vm611, %v613, %v609
    %v615 = vmul.f32 1.0, %v614
    %v616 = vmul.f32 %v615, %v562
    %618 = vrot.lane.b32.xlu0 %v615, 64
    %v619 = vpop.permute.xlu0 %618
    %v621 = vmul.f32 %v615, %v619
    %623 = vrot.lane.b32.xlu0 %v621, 32
    %v624 = vpop.permute.xlu0 %623
    %v626 = vadd.f32 %v616, %v624
    %v627 = vtanh.pop %v626
    %629 = vrot.lane.b32.xlu0 %v627, 64
    %v630 = vpop.permute.xlu0 %629
    %v632 = vmul.f32 %v615, %v630
    %s633 = scalar_lea.vmem [#allocation2], 56
    %v634 = vld [vmem:[%s633] sm:$0xff]
    %636 = vrot.lane.b32.xlu0 %v632, 32
    %v637 = vpop.permute.xlu0 %636
    %v638 = vsel %vm171, %v637, 0
    %640 = vmatpush.msra.mxu0 0.0
    %641 = vmatpush.msra.mxu0 0.0
    %642 = vmatpush.msra.mxu0 0.0
    %643 = vmatpush.msra.mxu0 0.0
    %644 = vmatpush.msra.mxu0 0.0
    %645 = vmatpush.msra.mxu0 0.0
    %646 = vmatpush.msra.mxu0 0.0
    %647 = vmatpush.msra.mxu0 0.0
    %648 = vmatpush.msra.mxu0 0.0
    %649 = vmatpush.msra.mxu0 0.0
    %650 = vmatpush.msra.mxu0 0.0
    %651 = vmatpush.msra.mxu0 0.0
    %652 = vmatpush.msra.mxu0 %v167
    %653 = vmatpush.msra.mxu0 %v166
    %654 = vmatpush.msra.mxu0 %v165
    %655 = vmatpush.msra.mxu0 %v164
    %656 = vmatmul.f32.gmra.mxu0 %v638
    %v657 = vpop.f32.mrf.mxu0
    %v658 = vadd.f32 0.0, %v657
    %659 = vdwg.mxu0
    %v660 = vadd.f32 %v634, %v658
    %v661 = vxor.u32 %v660, 2147483648
    %v662 = vmul.f32 %v661, 1.442695
    %v663 = vpow.pop %v662
    %v664 = vadd.f32 %v663, 1.0
    %v665 = vrcp.pop %v664
    %v666 = vmul.f32 %v664, %v665
    %v667 = vsub.f32 1.0, %v666
    %v668 = vmul.f32 %v665, %v667
    %v669 = vadd.f32 %v665, %v668
    %vm670 = vweird.f32 %v664
    %vm671 = vweird.f32 %v665
    %vm672 = vmor %vm670, %vm671
    %v673 = vsel %vm672, %v665, %v669
    %v674 = vand.u32 2147483647, %v664
    %vm675 = vcmp.eq.f32.partialorder %v674, 8.507059e+37
    %v676 = vand.u32 %v664, 2147483648
    %v677 = vor.u32 1.1754944e-38, %v676
    %v678 = vsel %vm675, %v677, %v673
    %v679 = vmul.f32 1.0, %v678
    %v680 = vmul.f32 %v679, %v626
    %682 = vrot.lane.b32.xlu0 %v679, 64
    %v683 = vpop.permute.xlu0 %682
    %v685 = vmul.f32 %v679, %v683
    %687 = vrot.lane.b32.xlu0 %v685, 32
    %v688 = vpop.permute.xlu0 %687
    %v690 = vadd.f32 %v680, %v688
    %v691 = vtanh.pop %v690
    %693 = vrot.lane.b32.xlu0 %v691, 64
    %v694 = vpop.permute.xlu0 %693
    %v696 = vmul.f32 %v679, %v694
    %698 = vrot.lane.b32.xlu0 %v568, 64
    %v699 = vpop.permute.xlu0 %698
    %701 = vrot.lane.b32.xlu0 %v632, 96
    %v702 = vpop.permute.xlu0 %701
    %v704 = vsel %vm171, %v509, %v699
    %v705 = vsel %vm436, %v704, %v702
    %v706 = vsel %vm438, %v705, %v696
    %s707 = scalar_lea.vmem [#allocation11], 8
    %708 = vst [vmem:[%s707] sm:$0xff] %v706
    %710 = vrot.lane.b32.xlu0 %v696, 32
    %v711 = vpop.permute.xlu0 %710
    %713 = vst.msk [vmem:[#allocation3] sm:$0xff] %vm171, %v711
    %715 = vrot.lane.b32.xlu0 %v690, 96
    %v716 = vpop.permute.xlu0 %715
    %718 = vst.msk [vmem:[#allocation4] sm:$0xff] %vm171, %v716
    // Predicated region
    $region34: #{tpu_custom_call.1} parent=1 // pred_check
      %p719 = pneg %p69
    $region35: #{tpu_custom_call.1} parent=1 // pred_check_branch
      %721 = sbr.rel (%p719) target = $region37
    $region36: #{tpu_custom_call.1} parent=1 // pred_region
      %722 = vst.msk [vmem:[#allocation12] sm:$0xff] %vm171, %v711
      %723 = vst.msk [vmem:[#allocation14] sm:$0xff] %vm171, %v716
    $region37: #{tpu_custom_call.1} parent=1 // pred_fallthru
      _
    // Predicated region
    $region38: #{tpu_custom_call.1} parent=1 // pred_check
      _
    $region39: #{tpu_custom_call.1} parent=1 // pred_check_branch
      %725 = sbr.rel (0) target = $region41
    $region40: #{tpu_custom_call.1} parent=1 // pred_region
      %727 = vsyncadd [#allocation7], 0
      %s728 = sshll.u32 [#allocation11], 4
      %s729 = int_to_ptr.vmem [resolvable:$true] %s728
      %s730 = sshll.u32 %s4, 4
      %s731 = int_to_ptr.hbm [resolvable:$true] %s730
      %736 = dma.vmem_to_hbm [thread:$0]  %s729, 256, %s731, [#allocation7], 128, 128, 8
    $region41: #{tpu_custom_call.1} parent=1 // pred_fallthru
      _
    // Predicated region
    $region42: #{tpu_custom_call.1} parent=1 // pred_check
      _
    $region43: #{tpu_custom_call.1} parent=1 // pred_check_branch
      %738 = sbr.rel (0) target = $region45
    $region44: #{tpu_custom_call.1} parent=1 // pred_region
      %740 = vsyncadd [#allocation13], 0
      %s742 = sshll.u32 [#allocation12], 4
      %s743 = int_to_ptr.vmem [resolvable:$true] %s742
      %s744 = sshll.u32 %s5, 4
      %s745 = int_to_ptr.hbm [resolvable:$true] %s744
      %747 = dma.vmem_to_hbm [thread:$0]  %s743, 128, %s745, [#allocation13]
    $region45: #{tpu_custom_call.1} parent=1 // pred_fallthru
      _
    // Predicated region
    $region46: #{tpu_custom_call.1} parent=1 // pred_check
      _
    $region47: #{tpu_custom_call.1} parent=1 // pred_check_branch
      %749 = sbr.rel (0) target = $region49
    $region48: #{tpu_custom_call.1} parent=1 // pred_region
      %751 = vsyncadd [#allocation13], 0
      %s753 = sshll.u32 [#allocation14], 4
      %s754 = int_to_ptr.vmem [resolvable:$true] %s753
      %s755 = sshll.u32 %s6, 4
      %s756 = int_to_ptr.hbm [resolvable:$true] %s755
      %758 = dma.vmem_to_hbm [thread:$0]  %s754, 128, %s756, [#allocation13]
    $region49: #{tpu_custom_call.1} parent=1 // pred_fallthru
      _
    // Predicated region
    $region50: #{tpu_custom_call.1} parent=1 // pred_check
      _
    $region51: #{tpu_custom_call.1} parent=1 // pred_check_branch
      %760 = sbr.rel (0) target = $region53
    $region52: #{tpu_custom_call.1} parent=1 // pred_region
      %762 = dma.done [#allocation7], 256
    $region53: #{tpu_custom_call.1} parent=1 // pred_fallthru
      _
    // Predicated region
    $region54: #{tpu_custom_call.1} parent=1 // pred_check
      _
    $region55: #{tpu_custom_call.1} parent=1 // pred_check_branch
      %764 = sbr.rel (0) target = $region57
    $region56: #{tpu_custom_call.1} parent=1 // pred_region
      %766 = dma.done [#allocation13], 128
    $region57: #{tpu_custom_call.1} parent=1 // pred_fallthru
      _
    // Predicated region
    $region58: #{tpu_custom_call.1} parent=1 // pred_check
      _
    $region59: #{tpu_custom_call.1} parent=1 // pred_check_branch
      %768 = sbr.rel (0) target = $region61
    $region60: #{tpu_custom_call.1} parent=1 // pred_region
      %770 = dma.done [#allocation13], 128
    $region61: #{tpu_custom_call.1} parent=1 // pred_fallthru
      _
    %771 = vsyncpa [#allocation6], 1
    %772 = vsyncpa [#allocation9], 1
    %773 = vsyncpa [#allocation7], 1
    %774 = vsyncpa [#allocation13], 1

</llo_original>
